<compile_context>
chip_gen: v7x
topology: tpu7x:2x2x1
jax: 0.10.0
libtpu: 0.0.40
codegen_flags: <defaults>
</compile_context>

<pallas_src>
import jax
import jax.numpy as jnp
from jax.experimental import pallas as pl
from jax.experimental.pallas import tpu as pltpu  # noqa: F401  (TPU backend assumed)

EPS = 1e-5  # BatchNorm2d default eps


def conv_bn_kernel(x_ref, p_ref, o_ref):
    # x_ref: (N, Cin, HW)      NCHW input with spatial dims flattened (free view)
    # p_ref: (Cout, Cin + 2)   columns [0:Cin] = conv weight, Cin = gamma, Cin+1 = beta
    # o_ref: (N, Cout, HW)     lane-dense output (HW on the lane axis)
    N, Cin, HW = x_ref.shape
    Cout = p_ref.shape[0]

    x = x_ref[...]
    p = p_ref[...]
    w = p[:, 0:Cin]                                   # (Cout, Cin)
    gamma = p[:, Cin:Cin + 1].reshape(1, Cout, 1)     # (1, Cout, 1)
    beta = p[:, Cin + 1:Cin + 2].reshape(1, Cout, 1)  # (1, Cout, 1)

    # 1x1 conv == Cin broadcast multiply-adds on the VPU (conv bias omitted: it cancels
    # exactly in the training-mode BN mean-centering below).
    y = w[:, 0:1].reshape(1, Cout, 1) * x[:, 0:1, :]
    for ci in range(1, Cin):
        y = y + w[:, ci:ci + 1].reshape(1, Cout, 1) * x[:, ci:ci + 1, :]
    # y: (N, Cout, HW)

    # Single-pass BatchNorm2d training statistics (biased) over (N, HW) per channel.
    # sum(y) and sum(y*y) are independent reduces -> overlap in the XLU.
    inv_count = 1.0 / float(N * HW)
    s1 = jnp.sum(jnp.sum(y, axis=2, keepdims=True), axis=0, keepdims=True)       # (1,Cout,1)
    s2 = jnp.sum(jnp.sum(y * y, axis=2, keepdims=True), axis=0, keepdims=True)   # (1,Cout,1)
    mean = s1 * inv_count
    var = s2 * inv_count - mean * mean        # E[y^2] - mean^2 (fine at these magnitudes)
    inv_std = jax.lax.rsqrt(var + EPS)

    scale = gamma * inv_std                   # fold per-channel row ops first
    shift = beta - mean * scale
    o_ref[...] = y * scale + shift            # single fused FMA pass over the output tile


def conv_bias_batchnorm(x_nchw, w_oi, bias, gamma, beta):
    """x_nchw: (N, Cin, H, W); w_oi: (Cout, Cin); bias/gamma/beta: (Cout,).

    `bias` is accepted for API parity with the PyTorch module but unused: under
    training-mode BatchNorm the conv bias cancels exactly in the mean-centering.
    """
    del bias  # cancels in BN centering -- identical forward output
    N, Cin, H, W = x_nchw.shape
    Cout = w_oi.shape[0]
    HW = H * W

    x3 = x_nchw.reshape(N, Cin, HW).astype(jnp.float32)            # free view, no transpose
    # Pack conv weight + gamma + beta into ONE small parameter block -> single DMA.
    params = jnp.concatenate(
        [w_oi.astype(jnp.float32),
         gamma.astype(jnp.float32)[:, None],
         beta.astype(jnp.float32)[:, None]],
        axis=1)                                                    # (Cout, Cin + 2)

    flops = N * Cout * HW * (2 * Cin + 5)        # conv FMAs + stats + output FMA (approx)
    bytes_accessed = 4 * (N * Cin * HW + Cout * (Cin + 2) + N * Cout * HW)

    out3 = pl.pallas_call(
        conv_bn_kernel,
        out_shape=jax.ShapeDtypeStruct((N, Cout, HW), jnp.float32),
        in_specs=[
            pl.BlockSpec((N, Cin, HW), lambda: (0, 0, 0)),
            pl.BlockSpec((Cout, Cin + 2), lambda: (0, 0)),
        ],
        out_specs=pl.BlockSpec((N, Cout, HW), lambda: (0, 0, 0)),
        cost_estimate=pl.CostEstimate(
            flops=flops, transcendentals=Cout, bytes_accessed=bytes_accessed),
    )(x3, params)

    return out3.reshape(N, Cout, H, W)                             # free view back to NCHW


def reference(x_nchw, w_oi, bias, gamma, beta):
    # pure-JAX reference (includes the conv bias, which the kernel provably drops)
    y = jnp.einsum("nchw,oc->nohw", x_nchw, w_oi) + bias[None, :, None, None]
    mean = jnp.mean(y, axis=(0, 2, 3), keepdims=True)
    var = jnp.mean((y - mean) ** 2, axis=(0, 2, 3), keepdims=True)
    return (y - mean) / jnp.sqrt(var + EPS) * gamma[None, :, None, None] \
        + beta[None, :, None, None]


if __name__ == "__main__":
    key = jax.random.PRNGKey(0)
    k_x, k_w, k_b = jax.random.split(key, 3)

    N, Cin, H, W, Cout = 2, 3, 10, 10, 5  # matches ConvBiasBatchNormModel

    x = jax.random.uniform(k_x, (N, Cin, H, W), dtype=jnp.float32)
    # PyTorch shapes: conv weight (5,3,1,1) squeezed to (5,3), bias (5,)
    conv_w = jax.random.normal(k_w, (Cout, Cin), dtype=jnp.float32) * 0.1
    conv_b = jax.random.normal(k_b, (Cout,), dtype=jnp.float32) * 0.1
    bn_gamma = jnp.ones((Cout,), dtype=jnp.float32)   # BatchNorm2d default init
    bn_beta = jnp.zeros((Cout,), dtype=jnp.float32)

    out = conv_bias_batchnorm(x, conv_w, conv_b, bn_gamma, bn_beta)
    out = jax.block_until_ready(out)

    ref = reference(x, conv_w, conv_b, bn_gamma, bn_beta)
    assert out.shape == (N, Cout, H, W)
    assert jnp.allclose(out, ref, atol=1e-4, rtol=1e-4), "mismatch vs reference"

    print("KERNEL_OK")
</pallas_src>

<mosaic_0001>
module attributes {stable_mosaic.version = 11 : i64} {
  func.func @conv_bn_kernel(%arg0: memref<2x3x100xf32, #tpu.memory_space<vmem>>, %arg1: memref<5x5xf32, #tpu.memory_space<vmem>>, %arg2: memref<2x5x100xf32, #tpu.memory_space<vmem>>) attributes {dimension_semantics = [], scalar_prefetch = 0 : i64, scratch_operands = 0 : i64, tpu.core_type = #tpu.core_type<tc>} {
    %c0 = arith.constant 0 : index
    %c0_0 = arith.constant 0 : index
    %c0_1 = arith.constant 0 : index
    %0 = vector.load %arg0[%c0, %c0_0, %c0_1] : memref<2x3x100xf32, #tpu.memory_space<vmem>>, vector<2x3x100xf32>
    %c0_2 = arith.constant 0 : index
    %c0_3 = arith.constant 0 : index
    %1 = vector.load %arg1[%c0_2, %c0_3] : memref<5x5xf32, #tpu.memory_space<vmem>>, vector<5x5xf32>
    %2 = vector.extract_strided_slice %1 {offsets = [0, 0], sizes = [5, 3], strides = [1, 1]} : vector<5x5xf32> to vector<5x3xf32>
    %3 = vector.extract_strided_slice %1 {offsets = [0, 3], sizes = [5, 1], strides = [1, 1]} : vector<5x5xf32> to vector<5x1xf32>
    %4 = vector.shape_cast %3 : vector<5x1xf32> to vector<1x5x1xf32>
    %5 = vector.extract_strided_slice %1 {offsets = [0, 4], sizes = [5, 1], strides = [1, 1]} : vector<5x5xf32> to vector<5x1xf32>
    %6 = vector.shape_cast %5 : vector<5x1xf32> to vector<1x5x1xf32>
    %7 = vector.extract_strided_slice %2 {offsets = [0, 0], sizes = [5, 1], strides = [1, 1]} : vector<5x3xf32> to vector<5x1xf32>
    %8 = vector.shape_cast %7 : vector<5x1xf32> to vector<1x5x1xf32>
    %9 = vector.extract_strided_slice %0 {offsets = [0, 0, 0], sizes = [2, 1, 100], strides = [1, 1, 1]} : vector<2x3x100xf32> to vector<2x1x100xf32>
    %10 = vector.broadcast %8 : vector<1x5x1xf32> to vector<2x5x100xf32>
    %11 = vector.broadcast %9 : vector<2x1x100xf32> to vector<2x5x100xf32>
    %12 = arith.mulf %10, %11 : vector<2x5x100xf32>
    %13 = vector.extract_strided_slice %2 {offsets = [0, 1], sizes = [5, 1], strides = [1, 1]} : vector<5x3xf32> to vector<5x1xf32>
    %14 = vector.shape_cast %13 : vector<5x1xf32> to vector<1x5x1xf32>
    %15 = vector.extract_strided_slice %0 {offsets = [0, 1, 0], sizes = [2, 1, 100], strides = [1, 1, 1]} : vector<2x3x100xf32> to vector<2x1x100xf32>
    %16 = vector.broadcast %14 : vector<1x5x1xf32> to vector<2x5x100xf32>
    %17 = vector.broadcast %15 : vector<2x1x100xf32> to vector<2x5x100xf32>
    %18 = arith.mulf %16, %17 : vector<2x5x100xf32>
    %19 = arith.addf %12, %18 : vector<2x5x100xf32>
    %20 = vector.extract_strided_slice %2 {offsets = [0, 2], sizes = [5, 1], strides = [1, 1]} : vector<5x3xf32> to vector<5x1xf32>
    %21 = vector.shape_cast %20 : vector<5x1xf32> to vector<1x5x1xf32>
    %22 = vector.extract_strided_slice %0 {offsets = [0, 2, 0], sizes = [2, 1, 100], strides = [1, 1, 1]} : vector<2x3x100xf32> to vector<2x1x100xf32>
    %23 = vector.broadcast %21 : vector<1x5x1xf32> to vector<2x5x100xf32>
    %24 = vector.broadcast %22 : vector<2x1x100xf32> to vector<2x5x100xf32>
    %25 = arith.mulf %23, %24 : vector<2x5x100xf32>
    %26 = arith.addf %19, %25 : vector<2x5x100xf32>
    %cst = arith.constant dense<0.000000e+00> : vector<2x5xf32>
    %27 = vector.multi_reduction <add>, %26, %cst [2] : vector<2x5x100xf32> to vector<2x5xf32>
    %28 = vector.shape_cast %27 : vector<2x5xf32> to vector<2x5x1xf32>
    %cst_4 = arith.constant dense<0.000000e+00> : vector<5x1xf32>
    %29 = vector.multi_reduction <add>, %28, %cst_4 [0] : vector<2x5x1xf32> to vector<5x1xf32>
    %30 = vector.shape_cast %29 : vector<5x1xf32> to vector<1x5x1xf32>
    %31 = arith.mulf %26, %26 : vector<2x5x100xf32>
    %cst_5 = arith.constant dense<0.000000e+00> : vector<2x5xf32>
    %32 = vector.multi_reduction <add>, %31, %cst_5 [2] : vector<2x5x100xf32> to vector<2x5xf32>
    %33 = vector.shape_cast %32 : vector<2x5xf32> to vector<2x5x1xf32>
    %cst_6 = arith.constant dense<0.000000e+00> : vector<5x1xf32>
    %34 = vector.multi_reduction <add>, %33, %cst_6 [0] : vector<2x5x1xf32> to vector<5x1xf32>
    %35 = vector.shape_cast %34 : vector<5x1xf32> to vector<1x5x1xf32>
    %cst_7 = arith.constant 5.000000e-03 : f32
    %36 = vector.broadcast %cst_7 : f32 to vector<1x5x1xf32>
    %37 = arith.mulf %30, %36 : vector<1x5x1xf32>
    %cst_8 = arith.constant 5.000000e-03 : f32
    %38 = vector.broadcast %cst_8 : f32 to vector<1x5x1xf32>
    %39 = arith.mulf %35, %38 : vector<1x5x1xf32>
    %40 = arith.mulf %37, %37 : vector<1x5x1xf32>
    %41 = arith.subf %39, %40 : vector<1x5x1xf32>
    %cst_9 = arith.constant 9.99999974E-6 : f32
    %42 = vector.broadcast %cst_9 : f32 to vector<1x5x1xf32>
    %43 = arith.addf %41, %42 : vector<1x5x1xf32>
    %44 = math.rsqrt %43 : vector<1x5x1xf32>
    %45 = arith.mulf %4, %44 : vector<1x5x1xf32>
    %46 = arith.mulf %37, %45 : vector<1x5x1xf32>
    %47 = arith.subf %6, %46 : vector<1x5x1xf32>
    %48 = vector.broadcast %45 : vector<1x5x1xf32> to vector<2x5x100xf32>
    %49 = arith.mulf %26, %48 : vector<2x5x100xf32>
    %50 = vector.broadcast %47 : vector<1x5x1xf32> to vector<2x5x100xf32>
    %51 = arith.addf %49, %50 : vector<2x5x100xf32>
    %c0_10 = arith.constant 0 : index
    %c0_11 = arith.constant 0 : index
    %c0_12 = arith.constant 0 : index
    %52 = vector.load %arg2[%c0_10, %c0_11, %c0_12] : memref<2x5x100xf32, #tpu.memory_space<vmem>>, vector<2x5x100xf32>
    tpu.vector_store %arg2[%c0_10, %c0_11, %c0_12], %51 {strides = array<i32>} : memref<2x5x100xf32, #tpu.memory_space<vmem>>, vector<2x5x100xf32>,
    return
  }
}

</mosaic_0001>

<llo_original>
// kernel: tpu_custom_call.1
$region0: #{tpu_custom_call.1}
  #allocation0 [shape = 'u32[]', space=smem, size = 0x4, offset = 0x4, fixed_abs, tag = 'smem constant byte address 0x4 - core index']
  #allocation1 [shape = 'u32[144,128]{1,0:T(1,128)}', space=vmem, size = 0x12000, scoped, tag = 'internal scratch']
  %s0 = inlined_call_operand.vmem [shape: f32[2,3,100], index: 0, kind: input, shape index: {}]
  %s1 = inlined_call_operand.vmem [shape: f32[5,5], index: 1, kind: input, shape index: {}]
  %s2 = inlined_call_operand.vmem [shape: f32[2,5,100], index: 2, kind: output, shape index: {}]
  %s3 = sld [smem:[#allocation0]]
  $region18: #{tpu_custom_call.1} parent=0
    _
  %s5 = ssub.s32 1, %s3
  %s6 = scalar_select 0, %s5, %s3
  // Predicated region
  $region2: #{tpu_custom_call.1} parent=0 // pred_check
    _
  $region3: #{tpu_custom_call.1} parent=0 // pred_check_branch
    %8 = sbr.rel (0) target = $region5
  $region4: #{tpu_custom_call.1} parent=0 // pred_region
    _
  $region5: #{tpu_custom_call.1} parent=0 // pred_fallthru
    _
  // Predicated region
  $region6: #{tpu_custom_call.1} parent=0 // pred_check
    _
  $region7: #{tpu_custom_call.1} parent=0 // pred_check_branch
    %10 = sbr.rel (0) target = $region9
  $region8: #{tpu_custom_call.1} parent=0 // pred_region
    _
  $region9: #{tpu_custom_call.1} parent=0 // pred_fallthru
    _
  %v11 = vld [vmem:[%s0] sm:$0x7]
  %v12 = vld [vmem:[%s0 + $0x4] sm:$0x7]
  %v13 = vld [vmem:[%s1] sm:$0x1f]
  %15 = vset.pattern.permute.xlu0 0
  %16 = vperm.xlu0 %15, %v13
  %v17 = vpop.permute.xlu0 %16
  %v19 = vlaneseq
  %v20 = vshrl.u32 %v19, 7
  %v21 = vsub.s32 0, %v20
  %v22 = vrot.slane %v11, %v21
  %v23 = vlaneseq
  %v24 = vshrl.u32 %v23, 7
  %v25 = vsub.s32 0, %v24
  %v26 = vrot.slane %v12, %v25
  %v27 = vmul.f32 %v17, %v22
  %v28 = vmul.f32 %v17, %v26
  %29 = vset.pattern.permute.xlu0 1
  %30 = vperm.xlu0 %29, %v13
  %v31 = vpop.permute.xlu0 %30
  %v33 = vlaneseq
  %v34 = vshrl.u32 %v33, 7
  %v35 = vsub.s32 1, %v34
  %v36 = vrot.slane %v11, %v35
  %v37 = vlaneseq
  %v38 = vshrl.u32 %v37, 7
  %v39 = vsub.s32 1, %v38
  %v40 = vrot.slane %v12, %v39
  %v41 = vmul.f32 %v31, %v36
  %v42 = vmul.f32 %v31, %v40
  %v43 = vadd.f32 %v27, %v41
  %v44 = vadd.f32 %v28, %v42
  %45 = vset.pattern.permute.xlu0 2
  %46 = vperm.xlu0 %45, %v13
  %v47 = vpop.permute.xlu0 %46
  %v49 = vlaneseq
  %v50 = vshrl.u32 %v49, 7
  %v51 = vsub.s32 2, %v50
  %v52 = vrot.slane %v11, %v51
  %v53 = vlaneseq
  %v54 = vshrl.u32 %v53, 7
  %v55 = vsub.s32 2, %v54
  %v56 = vrot.slane %v12, %v55
  %v57 = vmul.f32 %v47, %v52
  %v58 = vmul.f32 %v47, %v56
  %v59 = vadd.f32 %v43, %v57
  %v60 = vadd.f32 %v44, %v58
  %vm61 = vcmask 815104
  %v62 = vsel %vm61, %v59, 0.0
  %63 = vadd.xlane.f32.xlu0 %v62
  %v64 = vpop.xlane.xlu0 %63
  %v65 = vsel %vm61, %v60, 0.0
  %66 = vadd.xlane.f32.xlu0 %v65
  %v67 = vpop.xlane.xlu0 %66
  %vm68 = vcmask 1044480
  %v69 = vsel %vm68, %v64, 0.0
  %v70 = vsel %vm68, %v67, 0.0
  %v71 = vadd.f32 %v69, %v70
  %v72 = vmul.f32 %v59, %v59
  %v73 = vmul.f32 %v60, %v60
  %v74 = vsel %vm61, %v72, 0.0
  %75 = vadd.xlane.f32.xlu0 %v74
  %v76 = vpop.xlane.xlu0 %75
  %v77 = vsel %vm61, %v73, 0.0
  %78 = vadd.xlane.f32.xlu0 %v77
  %v79 = vpop.xlane.xlu0 %78
  %v80 = vsel %vm68, %v76, 0.0
  %v81 = vsel %vm68, %v79, 0.0
  %v82 = vadd.f32 %v80, %v81
  %v83 = vmul.f32 %v71, 0.005
  %v84 = vmul.f32 %v82, 0.005
  %v85 = vmul.f32 %v83, %v83
  %v86 = vsub.f32 %v84, %v85
  %v87 = vadd.f32 %v86, 1e-05
  %v88 = vrsqrt.pop %v87
  %v89 = vmul.f32 %v13, %v88
  %v90 = vmul.f32 %v83, %v89
  %92 = vrot.lane.b32.xlu0 %v90, 1
  %v93 = vpop.permute.xlu0 %92
  %v95 = vsub.f32 %v13, %v93
  %97 = vset.pattern.permute.xlu0 3
  %98 = vperm.xlu0 %97, %v89
  %v99 = vpop.permute.xlu0 %98
  %v101 = vmul.f32 %v59, %v99
  %v102 = vmul.f32 %v60, %v99
  %104 = vset.pattern.permute.xlu0 4
  %105 = vperm.xlu0 %104, %v95
  %v106 = vpop.permute.xlu0 %105
  %v108 = vadd.f32 %v101, %v106
  %v109 = vadd.f32 %v102, %v106
  %110 = vst.msk [vmem:[%s2] sm:$0x1f] %vm61, %v108
  %111 = vst.msk [vmem:[%s2 + $0x8] sm:$0x1f] %vm61, %v109
  // Predicated region
  $region10: #{tpu_custom_call.1} parent=0 // pred_check
    _
  $region11: #{tpu_custom_call.1} parent=0 // pred_check_branch
    %113 = sbr.rel (0) target = $region13
  $region12: #{tpu_custom_call.1} parent=0 // pred_region
    _
  $region13: #{tpu_custom_call.1} parent=0 // pred_fallthru
    _
  // Predicated region
  $region14: #{tpu_custom_call.1} parent=0 // pred_check
    _
  $region15: #{tpu_custom_call.1} parent=0 // pred_check_branch
    %115 = sbr.rel (0) target = $region17
  $region16: #{tpu_custom_call.1} parent=0 // pred_region
    _
  $region17: #{tpu_custom_call.1} parent=0 // pred_fallthru
    _

</llo_original>
